<compile_context>
chip_gen: v7x
topology: tpu7x:2x2x1
jax: 0.10.0
libtpu: 0.0.40
codegen_flags: <defaults>
</compile_context>

<pallas_src>
import math
import jax
import jax.numpy as jnp
from jax.experimental import pallas as pl
from jax.experimental.pallas import tpu as pltpu

K_PAD = 768   # flattened conv features: 26*26 = 676 -> 6*128
H_PAD = 256   # hidden width:            200       -> 2*128
O_PAD = 128   # logits:                  10        -> 1*128 (lane-dense store)


def _round_up(n, m):
    return ((n + m - 1) // m) * m


def conv3x3_kernel(w_ref, x_ref, o_ref):
    """w_ref: (9,) SMEM conv taps; x_ref: (TM,28,28) VMEM; o_ref: (TM,26,26)."""
    x = x_ref[...]
    tm = x.shape[0]
    acc = jnp.zeros((tm, 26, 26), jnp.float32)
    for dy in range(3):                 # statically unrolled 9-tap stencil (VPU)
        for dx in range(3):
            acc = acc + w_ref[dy * 3 + dx] * x[:, dy:dy + 26, dx:dx + 26]
    o_ref[...] = acc


def mlp_kernel(x_ref, w0_ref, b0_ref, w1_ref, b1_ref, o_ref):
    """(TM,768)@(768,256) -> +b0 -> ReLU -> (TM,256)@(256,128) -> +b1."""
    h = jnp.dot(x_ref[...], w0_ref[...], preferred_element_type=jnp.float32)
    h = jnp.maximum(h + b0_ref[...], 0.0)
    out = jnp.dot(h, w1_ref[...], preferred_element_type=jnp.float32)
    o_ref[...] = (out + b1_ref[...]).astype(o_ref.dtype)


def digit_conv_model_forward(x, conv_w, w0, b0, w1, b1, *, tile_m=256):
    """x: (B, 784) f32 -> logits (B, 10) f32."""
    B = x.shape[0]
    TM = tile_m if B >= tile_m else _round_up(B, 8)
    B_pad = _round_up(B, TM)
    grid = (B_pad // TM,)
    parallel = pltpu.CompilerParams(dimension_semantics=("parallel",))

    x_img = x.reshape(B, 28, 28)
    if B_pad != B:
        x_img = jnp.pad(x_img, ((0, B_pad - B), (0, 0), (0, 0)))

    # --- kernel 1: per-sample 3x3 valid convolution (taps in SMEM) ---
    conv_out = pl.pallas_call(
        conv3x3_kernel,
        out_shape=jax.ShapeDtypeStruct((B_pad, 26, 26), jnp.float32),
        grid=grid,
        in_specs=[
            pl.BlockSpec(memory_space=pltpu.MemorySpace.SMEM),      # (9,) taps
            pl.BlockSpec((TM, 28, 28), lambda i: (i, 0, 0)),
        ],
        out_specs=pl.BlockSpec((TM, 26, 26), lambda i: (i, 0, 0)),
        compiler_params=parallel,
    )(conv_w.reshape(9).astype(jnp.float32), x_img)

    # --- wrapper-side flatten + zero-pad to lane-dense shapes (layout only) ---
    flat = conv_out.reshape(B_pad, 26 * 26)
    flat = jnp.pad(flat, ((0, 0), (0, K_PAD - 26 * 26)))
    w0p = jnp.pad(w0, ((0, K_PAD - w0.shape[0]), (0, H_PAD - w0.shape[1])))
    b0p = jnp.pad(b0.reshape(1, -1), ((0, 0), (0, H_PAD - b0.shape[0])))
    w1p = jnp.pad(w1, ((0, H_PAD - w1.shape[0]), (0, O_PAD - w1.shape[1])))
    b1p = jnp.pad(b1.reshape(1, -1), ((0, 0), (0, O_PAD - b1.shape[0])))

    # --- kernel 2: fused Linear(676,200)+ReLU+Linear(200,10), padded dims ---
    out_p = pl.pallas_call(
        mlp_kernel,
        out_shape=jax.ShapeDtypeStruct((B_pad, O_PAD), jnp.float32),
        grid=grid,
        in_specs=[
            pl.BlockSpec((TM, K_PAD), lambda i: (i, 0)),
            pl.BlockSpec((K_PAD, H_PAD), lambda i: (0, 0)),  # weights VMEM-resident
            pl.BlockSpec((1, H_PAD), lambda i: (0, 0)),
            pl.BlockSpec((H_PAD, O_PAD), lambda i: (0, 0)),
            pl.BlockSpec((1, O_PAD), lambda i: (0, 0)),
        ],
        out_specs=pl.BlockSpec((TM, O_PAD), lambda i: (i, 0)),
        compiler_params=parallel,
    )(flat, w0p, b0p, w1p, b1p)

    return out_p[:B, :10]


def _init_linear(kw, kb, fan_in, fan_out):
    """PyTorch nn.Linear default init; weight stored pre-transposed as (in, out)."""
    bound = 1.0 / math.sqrt(fan_in)
    w = jax.random.uniform(kw, (fan_in, fan_out), jnp.float32, -bound, bound)
    b = jax.random.uniform(kb, (fan_out,), jnp.float32, -bound, bound)
    return w, b


if __name__ == "__main__":
    key = jax.random.PRNGKey(0)
    kx, k0w, k0b, k1w, k1b = jax.random.split(key, 5)

    batch = 4
    x = jax.random.uniform(kx, (batch, 784), jnp.float32, 0.0, 1.0)  # MNIST-like pixels
    conv_w = jnp.ones((3, 3), jnp.float32)        # module init: Parameter(ones((3,3)))
    w0, b0 = _init_linear(k0w, k0b, 676, 200)     # linear0: Linear(676, 200)
    w1, b1 = _init_linear(k1w, k1b, 200, 10)      # linear1: Linear(200, 10)

    out = digit_conv_model_forward(x, conv_w, w0, b0, w1, b1)
    out = jax.block_until_ready(out)

    # Plain-JAX reference of the module's forward pass.
    x_img = x.reshape(batch, 28, 28)
    conv_ref = jnp.zeros((batch, 26, 26), jnp.float32)
    for dy in range(3):
        for dx in range(3):
            conv_ref = conv_ref + conv_w[dy, dx] * x_img[:, dy:dy + 26, dx:dx + 26]
    flat_ref = conv_ref.reshape(batch, 676)
    h_ref = jnp.maximum(
        jnp.dot(flat_ref, w0, precision=jax.lax.Precision.HIGHEST) + b0, 0.0)
    ref = jnp.dot(h_ref, w1, precision=jax.lax.Precision.HIGHEST) + b1

    assert out.shape == (batch, 10)
    assert jnp.allclose(out, ref, atol=1e-2, rtol=1e-2), \
        float(jnp.max(jnp.abs(out - ref)))
    print("KERNEL_OK")
</pallas_src>

<mosaic_0001>
module attributes {stable_mosaic.version = 11 : i64} {
  func.func @conv3x3_kernel(%arg0: i32, %arg1: memref<9xf32, #tpu.memory_space<smem>>, %arg2: memref<8x28x28xf32, #tpu.memory_space<vmem>>, %arg3: memref<8x26x26xf32, #tpu.memory_space<vmem>>) attributes {dimension_semantics = [#tpu.dimension_semantics<parallel>], iteration_bounds = array<i64: 1>, scalar_prefetch = 0 : i64, scratch_operands = 0 : i64, tpu.core_type = #tpu.core_type<tc>, window_params = [{transform_indices = @transform_0, window_bounds = array<i64: 9>}, {transform_indices = @transform_1, window_bounds = array<i64: 8, 28, 28>}, {transform_indices = @transform_2, window_bounds = array<i64: 8, 26, 26>}]} {
    %c0 = arith.constant 0 : index
    %c0_0 = arith.constant 0 : index
    %c0_1 = arith.constant 0 : index
    %0 = vector.load %arg2[%c0, %c0_0, %c0_1] : memref<8x28x28xf32, #tpu.memory_space<vmem>>, vector<8x28x28xf32>
    %cst = arith.constant 0.000000e+00 : f32
    %1 = vector.broadcast %cst : f32 to vector<8x26x26xf32>
    %c0_2 = arith.constant 0 : index
    %2 = memref.load %arg1[%c0_2] : memref<9xf32, #tpu.memory_space<smem>>
    %3 = vector.extract_strided_slice %0 {offsets = [0, 0, 0], sizes = [8, 26, 26], strides = [1, 1, 1]} : vector<8x28x28xf32> to vector<8x26x26xf32>
    %4 = vector.broadcast %2 : f32 to vector<8x26x26xf32>
    %5 = arith.mulf %4, %3 : vector<8x26x26xf32>
    %6 = arith.addf %1, %5 : vector<8x26x26xf32>
    %c1 = arith.constant 1 : index
    %7 = memref.load %arg1[%c1] : memref<9xf32, #tpu.memory_space<smem>>
    %8 = vector.extract_strided_slice %0 {offsets = [0, 0, 1], sizes = [8, 26, 26], strides = [1, 1, 1]} : vector<8x28x28xf32> to vector<8x26x26xf32>
    %9 = vector.broadcast %7 : f32 to vector<8x26x26xf32>
    %10 = arith.mulf %9, %8 : vector<8x26x26xf32>
    %11 = arith.addf %6, %10 : vector<8x26x26xf32>
    %c2 = arith.constant 2 : index
    %12 = memref.load %arg1[%c2] : memref<9xf32, #tpu.memory_space<smem>>
    %13 = vector.extract_strided_slice %0 {offsets = [0, 0, 2], sizes = [8, 26, 26], strides = [1, 1, 1]} : vector<8x28x28xf32> to vector<8x26x26xf32>
    %14 = vector.broadcast %12 : f32 to vector<8x26x26xf32>
    %15 = arith.mulf %14, %13 : vector<8x26x26xf32>
    %16 = arith.addf %11, %15 : vector<8x26x26xf32>
    %c3 = arith.constant 3 : index
    %17 = memref.load %arg1[%c3] : memref<9xf32, #tpu.memory_space<smem>>
    %18 = vector.extract_strided_slice %0 {offsets = [0, 1, 0], sizes = [8, 26, 26], strides = [1, 1, 1]} : vector<8x28x28xf32> to vector<8x26x26xf32>
    %19 = vector.broadcast %17 : f32 to vector<8x26x26xf32>
    %20 = arith.mulf %19, %18 : vector<8x26x26xf32>
    %21 = arith.addf %16, %20 : vector<8x26x26xf32>
    %c4 = arith.constant 4 : index
    %22 = memref.load %arg1[%c4] : memref<9xf32, #tpu.memory_space<smem>>
    %23 = vector.extract_strided_slice %0 {offsets = [0, 1, 1], sizes = [8, 26, 26], strides = [1, 1, 1]} : vector<8x28x28xf32> to vector<8x26x26xf32>
    %24 = vector.broadcast %22 : f32 to vector<8x26x26xf32>
    %25 = arith.mulf %24, %23 : vector<8x26x26xf32>
    %26 = arith.addf %21, %25 : vector<8x26x26xf32>
    %c5 = arith.constant 5 : index
    %27 = memref.load %arg1[%c5] : memref<9xf32, #tpu.memory_space<smem>>
    %28 = vector.extract_strided_slice %0 {offsets = [0, 1, 2], sizes = [8, 26, 26], strides = [1, 1, 1]} : vector<8x28x28xf32> to vector<8x26x26xf32>
    %29 = vector.broadcast %27 : f32 to vector<8x26x26xf32>
    %30 = arith.mulf %29, %28 : vector<8x26x26xf32>
    %31 = arith.addf %26, %30 : vector<8x26x26xf32>
    %c6 = arith.constant 6 : index
    %32 = memref.load %arg1[%c6] : memref<9xf32, #tpu.memory_space<smem>>
    %33 = vector.extract_strided_slice %0 {offsets = [0, 2, 0], sizes = [8, 26, 26], strides = [1, 1, 1]} : vector<8x28x28xf32> to vector<8x26x26xf32>
    %34 = vector.broadcast %32 : f32 to vector<8x26x26xf32>
    %35 = arith.mulf %34, %33 : vector<8x26x26xf32>
    %36 = arith.addf %31, %35 : vector<8x26x26xf32>
    %c7 = arith.constant 7 : index
    %37 = memref.load %arg1[%c7] : memref<9xf32, #tpu.memory_space<smem>>
    %38 = vector.extract_strided_slice %0 {offsets = [0, 2, 1], sizes = [8, 26, 26], strides = [1, 1, 1]} : vector<8x28x28xf32> to vector<8x26x26xf32>
    %39 = vector.broadcast %37 : f32 to vector<8x26x26xf32>
    %40 = arith.mulf %39, %38 : vector<8x26x26xf32>
    %41 = arith.addf %36, %40 : vector<8x26x26xf32>
    %c8 = arith.constant 8 : index
    %42 = memref.load %arg1[%c8] : memref<9xf32, #tpu.memory_space<smem>>
    %43 = vector.extract_strided_slice %0 {offsets = [0, 2, 2], sizes = [8, 26, 26], strides = [1, 1, 1]} : vector<8x28x28xf32> to vector<8x26x26xf32>
    %44 = vector.broadcast %42 : f32 to vector<8x26x26xf32>
    %45 = arith.mulf %44, %43 : vector<8x26x26xf32>
    %46 = arith.addf %41, %45 : vector<8x26x26xf32>
    %c0_3 = arith.constant 0 : index
    %c0_4 = arith.constant 0 : index
    %c0_5 = arith.constant 0 : index
    %47 = vector.load %arg3[%c0_3, %c0_4, %c0_5] : memref<8x26x26xf32, #tpu.memory_space<vmem>>, vector<8x26x26xf32>
    tpu.vector_store %arg3[%c0_3, %c0_4, %c0_5], %46 {strides = array<i32>} : memref<8x26x26xf32, #tpu.memory_space<vmem>>, vector<8x26x26xf32>,
    return
  }
  func.func @transform_0(%arg0: i32) -> i32 {
    %c0_i32 = arith.constant 0 : i32
    %c0_i32_0 = arith.constant 0 : i32
    return %c0_i32 : i32
  }
  func.func @transform_1(%arg0: i32) -> (i32, i32, i32) {
    %c0_i32 = arith.constant 0 : i32
    %c0_i32_0 = arith.constant 0 : i32
    %c0_i32_1 = arith.constant 0 : i32
    return %arg0, %c0_i32, %c0_i32_0 : i32, i32, i32
  }
  func.func @transform_2(%arg0: i32) -> (i32, i32, i32) {
    %c0_i32 = arith.constant 0 : i32
    %c0_i32_0 = arith.constant 0 : i32
    %c0_i32_1 = arith.constant 0 : i32
    return %arg0, %c0_i32, %c0_i32_0 : i32, i32, i32
  }
}

</mosaic_0001>

<llo_original>
// kernel: tpu_custom_call.1
$region0: #{tpu_custom_call.1}
  #allocation0 [shape = 'u32[]', space=smem, size = 0x4, offset = 0x4, fixed_abs, tag = 'smem constant byte address 0x4 - core index']
  #allocation1 [shape = 'u32[144,128]{1,0:T(1,128)}', space=vmem, size = 0x12000, scoped, tag = 'internal scratch']
  %s0 = inlined_call_operand.vmem [shape: f32[9], index: 0, kind: input, shape index: {}]
  %s1 = inlined_call_operand.vmem [shape: f32[8,28,28], index: 1, kind: input, shape index: {}]
  %s2 = inlined_call_operand.vmem [shape: f32[8,26,26], index: 2, kind: output, shape index: {}]
  %s3 = sld [smem:[#allocation0]]
  $region22: #{tpu_custom_call.1} parent=0
    _
  %s5 = ssub.s32 1, %s3
  %s6 = scalar_select 0, %s5, %s3
  $region1: #{tpu_custom_call.1} parent=0
    #allocation2 [shape = 'u8[512]{0}', space=smem, size = 0x200, scoped, tag = 'input window, operand 0, single buffered']
    #allocation3 [shape = 's32[1]{0}', space=sflag, size = 0x4, scoped, tag = 'scoped memory for tpu_custom_call.1']
    %7 = vsyncpa [#allocation3], 0
    // Predicated region
    $region2: #{tpu_custom_call.1} parent=1 // pred_check
      _
    $region3: #{tpu_custom_call.1} parent=1 // pred_check_branch
      %9 = sbr.rel (0) target = $region5
    $region4: #{tpu_custom_call.1} parent=1 // pred_region
      %s11 = ssub.s32 16, 16
      %12 = vsyncadd [#allocation3], %s11
      %s14 = sshll.u32 %s0, 4
      %s15 = int_to_ptr.vmem [resolvable:$true] %s14
      %17 = dma.vmem_to_smem %s15, 16, [#allocation2], [#allocation3]
    $region5: #{tpu_custom_call.1} parent=1 // pred_fallthru
      _
    // Predicated region
    $region6: #{tpu_custom_call.1} parent=1 // pred_check
      _
    $region7: #{tpu_custom_call.1} parent=1 // pred_check_branch
      %19 = sbr.rel (0) target = $region9
    $region8: #{tpu_custom_call.1} parent=1 // pred_region
      _
    $region9: #{tpu_custom_call.1} parent=1 // pred_fallthru
      _
    // Predicated region
    $region10: #{tpu_custom_call.1} parent=1 // pred_check
      _
    $region11: #{tpu_custom_call.1} parent=1 // pred_check_branch
      %21 = sbr.rel (0) target = $region13
    $region12: #{tpu_custom_call.1} parent=1 // pred_region
      %22 = dma.done [#allocation3], 16
    $region13: #{tpu_custom_call.1} parent=1 // pred_fallthru
      _
    %23 = sfence
    %v24 = vld [vmem:[%s1] sm:$0xff]
    %v25 = vld [vmem:[%s1 + $0x8] sm:$0xff]
    %v26 = vld [vmem:[%s1 + $0x10] sm:$0xff]
    %v27 = vld [vmem:[%s1 + $0x18] sm:$0xf]
    %v28 = vld [vmem:[%s1 + $0x20] sm:$0xff]
    %v29 = vld [vmem:[%s1 + $0x28] sm:$0xff]
    %v30 = vld [vmem:[%s1 + $0x30] sm:$0xff]
    %v31 = vld [vmem:[%s1 + $0x38] sm:$0xf]
    %v32 = vld [vmem:[%s1 + $0x40] sm:$0xff]
    %v33 = vld [vmem:[%s1 + $0x48] sm:$0xff]
    %v34 = vld [vmem:[%s1 + $0x50] sm:$0xff]
    %v35 = vld [vmem:[%s1 + $0x58] sm:$0xf]
    %v36 = vld [vmem:[%s1 + $0x60] sm:$0xff]
    %v37 = vld [vmem:[%s1 + $0x68] sm:$0xff]
    %v38 = vld [vmem:[%s1 + $0x70] sm:$0xff]
    %v39 = vld [vmem:[%s1 + $0x78] sm:$0xf]
    %v40 = vld [vmem:[%s1 + $0x80] sm:$0xff]
    %v41 = vld [vmem:[%s1 + $0x88] sm:$0xff]
    %v42 = vld [vmem:[%s1 + $0x90] sm:$0xff]
    %v43 = vld [vmem:[%s1 + $0x98] sm:$0xf]
    %v44 = vld [vmem:[%s1 + $0xa0] sm:$0xff]
    %v45 = vld [vmem:[%s1 + $0xa8] sm:$0xff]
    %v46 = vld [vmem:[%s1 + $0xb0] sm:$0xff]
    %v47 = vld [vmem:[%s1 + $0xb8] sm:$0xf]
    %v48 = vld [vmem:[%s1 + $0xc0] sm:$0xff]
    %v49 = vld [vmem:[%s1 + $0xc8] sm:$0xff]
    %v50 = vld [vmem:[%s1 + $0xd0] sm:$0xff]
    %v51 = vld [vmem:[%s1 + $0xd8] sm:$0xf]
    %v52 = vld [vmem:[%s1 + $0xe0] sm:$0xff]
    %v53 = vld [vmem:[%s1 + $0xe8] sm:$0xff]
    %v54 = vld [vmem:[%s1 + $0xf0] sm:$0xff]
    %v55 = vld [vmem:[%s1 + $0xf8] sm:$0xf]
    %s56 = sld [smem:[#allocation2]]
    %v57 = vstv %s56
    %v58 = vmul.f32 %v57, %v24
    %v59 = vmul.f32 %v57, %v25
    %v60 = vmul.f32 %v57, %v26
    %v61 = vmul.f32 %v57, %v27
    %v62 = vmul.f32 %v57, %v28
    %v63 = vmul.f32 %v57, %v29
    %v64 = vmul.f32 %v57, %v30
    %v65 = vmul.f32 %v57, %v31
    %v66 = vmul.f32 %v57, %v32
    %v67 = vmul.f32 %v57, %v33
    %v68 = vmul.f32 %v57, %v34
    %v69 = vmul.f32 %v57, %v35
    %v70 = vmul.f32 %v57, %v36
    %v71 = vmul.f32 %v57, %v37
    %v72 = vmul.f32 %v57, %v38
    %v73 = vmul.f32 %v57, %v39
    %v74 = vmul.f32 %v57, %v40
    %v75 = vmul.f32 %v57, %v41
    %v76 = vmul.f32 %v57, %v42
    %v77 = vmul.f32 %v57, %v43
    %v78 = vmul.f32 %v57, %v44
    %v79 = vmul.f32 %v57, %v45
    %v80 = vmul.f32 %v57, %v46
    %v81 = vmul.f32 %v57, %v47
    %v82 = vmul.f32 %v57, %v48
    %v83 = vmul.f32 %v57, %v49
    %v84 = vmul.f32 %v57, %v50
    %v85 = vmul.f32 %v57, %v51
    %v86 = vmul.f32 %v57, %v52
    %v87 = vmul.f32 %v57, %v53
    %v88 = vmul.f32 %v57, %v54
    %v89 = vmul.f32 %v57, %v55
    %v90 = vadd.f32 %v58, 0.0
    %v91 = vadd.f32 %v59, 0.0
    %v92 = vadd.f32 %v60, 0.0
    %v93 = vadd.f32 %v61, 0.0
    %v94 = vadd.f32 %v62, 0.0
    %v95 = vadd.f32 %v63, 0.0
    %v96 = vadd.f32 %v64, 0.0
    %v97 = vadd.f32 %v65, 0.0
    %v98 = vadd.f32 %v66, 0.0
    %v99 = vadd.f32 %v67, 0.0
    %v100 = vadd.f32 %v68, 0.0
    %v101 = vadd.f32 %v69, 0.0
    %v102 = vadd.f32 %v70, 0.0
    %v103 = vadd.f32 %v71, 0.0
    %v104 = vadd.f32 %v72, 0.0
    %v105 = vadd.f32 %v73, 0.0
    %v106 = vadd.f32 %v74, 0.0
    %v107 = vadd.f32 %v75, 0.0
    %v108 = vadd.f32 %v76, 0.0
    %v109 = vadd.f32 %v77, 0.0
    %v110 = vadd.f32 %v78, 0.0
    %v111 = vadd.f32 %v79, 0.0
    %v112 = vadd.f32 %v80, 0.0
    %v113 = vadd.f32 %v81, 0.0
    %v114 = vadd.f32 %v82, 0.0
    %v115 = vadd.f32 %v83, 0.0
    %v116 = vadd.f32 %v84, 0.0
    %v117 = vadd.f32 %v85, 0.0
    %v118 = vadd.f32 %v86, 0.0
    %v119 = vadd.f32 %v87, 0.0
    %v120 = vadd.f32 %v88, 0.0
    %v121 = vadd.f32 %v89, 0.0
    %s122 = sld [smem:[#allocation2 + $0x1]]
    %v123 = vstv %s122
    %v124 = vmul.f32 %v123, %v24
    %v125 = vmul.f32 %v123, %v25
    %v126 = vmul.f32 %v123, %v26
    %v127 = vmul.f32 %v123, %v27
    %v128 = vmul.f32 %v123, %v28
    %v129 = vmul.f32 %v123, %v29
    %v130 = vmul.f32 %v123, %v30
    %v131 = vmul.f32 %v123, %v31
    %v132 = vmul.f32 %v123, %v32
    %v133 = vmul.f32 %v123, %v33
    %v134 = vmul.f32 %v123, %v34
    %v135 = vmul.f32 %v123, %v35
    %v136 = vmul.f32 %v123, %v36
    %v137 = vmul.f32 %v123, %v37
    %v138 = vmul.f32 %v123, %v38
    %v139 = vmul.f32 %v123, %v39
    %v140 = vmul.f32 %v123, %v40
    %v141 = vmul.f32 %v123, %v41
    %v142 = vmul.f32 %v123, %v42
    %v143 = vmul.f32 %v123, %v43
    %v144 = vmul.f32 %v123, %v44
    %v145 = vmul.f32 %v123, %v45
    %v146 = vmul.f32 %v123, %v46
    %v147 = vmul.f32 %v123, %v47
    %v148 = vmul.f32 %v123, %v48
    %v149 = vmul.f32 %v123, %v49
    %v150 = vmul.f32 %v123, %v50
    %v151 = vmul.f32 %v123, %v51
    %v152 = vmul.f32 %v123, %v52
    %v153 = vmul.f32 %v123, %v53
    %v154 = vmul.f32 %v123, %v54
    %v155 = vmul.f32 %v123, %v55
    %188 = vrot.lane.b32.xlu0 %v124, 127
    %v189 = vpop.permute.xlu0 %188
    %190 = vrot.lane.b32.xlu0 %v125, 127
    %v191 = vpop.permute.xlu0 %190
    %192 = vrot.lane.b32.xlu0 %v126, 127
    %v193 = vpop.permute.xlu0 %192
    %194 = vrot.lane.b32.xlu0 %v127, 127
    %v195 = vpop.permute.xlu0 %194
    %196 = vrot.lane.b32.xlu0 %v128, 127
    %v197 = vpop.permute.xlu0 %196
    %198 = vrot.lane.b32.xlu0 %v129, 127
    %v199 = vpop.permute.xlu0 %198
    %200 = vrot.lane.b32.xlu0 %v130, 127
    %v201 = vpop.permute.xlu0 %200
    %202 = vrot.lane.b32.xlu0 %v131, 127
    %v203 = vpop.permute.xlu0 %202
    %204 = vrot.lane.b32.xlu0 %v132, 127
    %v205 = vpop.permute.xlu0 %204
    %206 = vrot.lane.b32.xlu0 %v133, 127
    %v207 = vpop.permute.xlu0 %206
    %208 = vrot.lane.b32.xlu0 %v134, 127
    %v209 = vpop.permute.xlu0 %208
    %210 = vrot.lane.b32.xlu0 %v135, 127
    %v211 = vpop.permute.xlu0 %210
    %212 = vrot.lane.b32.xlu0 %v136, 127
    %v213 = vpop.permute.xlu0 %212
    %214 = vrot.lane.b32.xlu0 %v137, 127
    %v215 = vpop.permute.xlu0 %214
    %216 = vrot.lane.b32.xlu0 %v138, 127
    %v217 = vpop.permute.xlu0 %216
    %218 = vrot.lane.b32.xlu0 %v139, 127
    %v219 = vpop.permute.xlu0 %218
    %220 = vrot.lane.b32.xlu0 %v140, 127
    %v221 = vpop.permute.xlu0 %220
    %222 = vrot.lane.b32.xlu0 %v141, 127
    %v223 = vpop.permute.xlu0 %222
    %224 = vrot.lane.b32.xlu0 %v142, 127
    %v225 = vpop.permute.xlu0 %224
    %226 = vrot.lane.b32.xlu0 %v143, 127
    %v227 = vpop.permute.xlu0 %226
    %228 = vrot.lane.b32.xlu0 %v144, 127
    %v229 = vpop.permute.xlu0 %228
    %230 = vrot.lane.b32.xlu0 %v145, 127
    %v231 = vpop.permute.xlu0 %230
    %232 = vrot.lane.b32.xlu0 %v146, 127
    %v233 = vpop.permute.xlu0 %232
    %234 = vrot.lane.b32.xlu0 %v147, 127
    %v235 = vpop.permute.xlu0 %234
    %236 = vrot.lane.b32.xlu0 %v148, 127
    %v237 = vpop.permute.xlu0 %236
    %238 = vrot.lane.b32.xlu0 %v149, 127
    %v239 = vpop.permute.xlu0 %238
    %240 = vrot.lane.b32.xlu0 %v150, 127
    %v241 = vpop.permute.xlu0 %240
    %242 = vrot.lane.b32.xlu0 %v151, 127
    %v243 = vpop.permute.xlu0 %242
    %244 = vrot.lane.b32.xlu0 %v152, 127
    %v245 = vpop.permute.xlu0 %244
    %246 = vrot.lane.b32.xlu0 %v153, 127
    %v247 = vpop.permute.xlu0 %246
    %248 = vrot.lane.b32.xlu0 %v154, 127
    %v249 = vpop.permute.xlu0 %248
    %250 = vrot.lane.b32.xlu0 %v155, 127
    %v251 = vpop.permute.xlu0 %250
    %v284 = vadd.f32 %v90, %v189
    %v285 = vadd.f32 %v91, %v191
    %v286 = vadd.f32 %v92, %v193
    %v287 = vadd.f32 %v93, %v195
    %v288 = vadd.f32 %v94, %v197
    %v289 = vadd.f32 %v95, %v199
    %v290 = vadd.f32 %v96, %v201
    %v291 = vadd.f32 %v97, %v203
    %v292 = vadd.f32 %v98, %v205
    %v293 = vadd.f32 %v99, %v207
    %v294 = vadd.f32 %v100, %v209
    %v295 = vadd.f32 %v101, %v211
    %v296 = vadd.f32 %v102, %v213
    %v297 = vadd.f32 %v103, %v215
    %v298 = vadd.f32 %v104, %v217
    %v299 = vadd.f32 %v105, %v219
    %v300 = vadd.f32 %v106, %v221
    %v301 = vadd.f32 %v107, %v223
    %v302 = vadd.f32 %v108, %v225
    %v303 = vadd.f32 %v109, %v227
    %v304 = vadd.f32 %v110, %v229
    %v305 = vadd.f32 %v111, %v231
    %v306 = vadd.f32 %v112, %v233
    %v307 = vadd.f32 %v113, %v235
    %v308 = vadd.f32 %v114, %v237
    %v309 = vadd.f32 %v115, %v239
    %v310 = vadd.f32 %v116, %v241
    %v311 = vadd.f32 %v117, %v243
    %v312 = vadd.f32 %v118, %v245
    %v313 = vadd.f32 %v119, %v247
    %v314 = vadd.f32 %v120, %v249
    %v315 = vadd.f32 %v121, %v251
    %s316 = sld [smem:[#allocation2 + $0x2]]
    %v317 = vstv %s316
    %v318 = vmul.f32 %v317, %v24
    %v319 = vmul.f32 %v317, %v25
    %v320 = vmul.f32 %v317, %v26
    %v321 = vmul.f32 %v317, %v27
    %v322 = vmul.f32 %v317, %v28
    %v323 = vmul.f32 %v317, %v29
    %v324 = vmul.f32 %v317, %v30
    %v325 = vmul.f32 %v317, %v31
    %v326 = vmul.f32 %v317, %v32
    %v327 = vmul.f32 %v317, %v33
    %v328 = vmul.f32 %v317, %v34
    %v329 = vmul.f32 %v317, %v35
    %v330 = vmul.f32 %v317, %v36
    %v331 = vmul.f32 %v317, %v37
    %v332 = vmul.f32 %v317, %v38
    %v333 = vmul.f32 %v317, %v39
    %v334 = vmul.f32 %v317, %v40
    %v335 = vmul.f32 %v317, %v41
    %v336 = vmul.f32 %v317, %v42
    %v337 = vmul.f32 %v317, %v43
    %v338 = vmul.f32 %v317, %v44
    %v339 = vmul.f32 %v317, %v45
    %v340 = vmul.f32 %v317, %v46
    %v341 = vmul.f32 %v317, %v47
    %v342 = vmul.f32 %v317, %v48
    %v343 = vmul.f32 %v317, %v49
    %v344 = vmul.f32 %v317, %v50
    %v345 = vmul.f32 %v317, %v51
    %v346 = vmul.f32 %v317, %v52
    %v347 = vmul.f32 %v317, %v53
    %v348 = vmul.f32 %v317, %v54
    %v349 = vmul.f32 %v317, %v55
    %382 = vrot.lane.b32.xlu0 %v318, 126
    %v383 = vpop.permute.xlu0 %382
    %384 = vrot.lane.b32.xlu0 %v319, 126
    %v385 = vpop.permute.xlu0 %384
    %386 = vrot.lane.b32.xlu0 %v320, 126
    %v387 = vpop.permute.xlu0 %386
    %388 = vrot.lane.b32.xlu0 %v321, 126
    %v389 = vpop.permute.xlu0 %388
    %390 = vrot.lane.b32.xlu0 %v322, 126
    %v391 = vpop.permute.xlu0 %390
    %392 = vrot.lane.b32.xlu0 %v323, 126
    %v393 = vpop.permute.xlu0 %392
    %394 = vrot.lane.b32.xlu0 %v324, 126
    %v395 = vpop.permute.xlu0 %394
    %396 = vrot.lane.b32.xlu0 %v325, 126
    %v397 = vpop.permute.xlu0 %396
    %398 = vrot.lane.b32.xlu0 %v326, 126
    %v399 = vpop.permute.xlu0 %398
    %400 = vrot.lane.b32.xlu0 %v327, 126
    %v401 = vpop.permute.xlu0 %400
    %402 = vrot.lane.b32.xlu0 %v328, 126
    %v403 = vpop.permute.xlu0 %402
    %404 = vrot.lane.b32.xlu0 %v329, 126
    %v405 = vpop.permute.xlu0 %404
    %406 = vrot.lane.b32.xlu0 %v330, 126
    %v407 = vpop.permute.xlu0 %406
    %408 = vrot.lane.b32.xlu0 %v331, 126
    %v409 = vpop.permute.xlu0 %408
    %410 = vrot.lane.b32.xlu0 %v332, 126
    %v411 = vpop.permute.xlu0 %410
    %412 = vrot.lane.b32.xlu0 %v333, 126
    %v413 = vpop.permute.xlu0 %412
    %414 = vrot.lane.b32.xlu0 %v334, 126
    %v415 = vpop.permute.xlu0 %414
    %416 = vrot.lane.b32.xlu0 %v335, 126
    %v417 = vpop.permute.xlu0 %416
    %418 = vrot.lane.b32.xlu0 %v336, 126
    %v419 = vpop.permute.xlu0 %418
    %420 = vrot.lane.b32.xlu0 %v337, 126
    %v421 = vpop.permute.xlu0 %420
    %422 = vrot.lane.b32.xlu0 %v338, 126
    %v423 = vpop.permute.xlu0 %422
    %424 = vrot.lane.b32.xlu0 %v339, 126
    %v425 = vpop.permute.xlu0 %424
    %426 = vrot.lane.b32.xlu0 %v340, 126
    %v427 = vpop.permute.xlu0 %426
    %428 = vrot.lane.b32.xlu0 %v341, 126
    %v429 = vpop.permute.xlu0 %428
    %430 = vrot.lane.b32.xlu0 %v342, 126
    %v431 = vpop.permute.xlu0 %430
    %432 = vrot.lane.b32.xlu0 %v343, 126
    %v433 = vpop.permute.xlu0 %432
    %434 = vrot.lane.b32.xlu0 %v344, 126
    %v435 = vpop.permute.xlu0 %434
    %436 = vrot.lane.b32.xlu0 %v345, 126
    %v437 = vpop.permute.xlu0 %436
    %438 = vrot.lane.b32.xlu0 %v346, 126
    %v439 = vpop.permute.xlu0 %438
    %440 = vrot.lane.b32.xlu0 %v347, 126
    %v441 = vpop.permute.xlu0 %440
    %442 = vrot.lane.b32.xlu0 %v348, 126
    %v443 = vpop.permute.xlu0 %442
    %444 = vrot.lane.b32.xlu0 %v349, 126
    %v445 = vpop.permute.xlu0 %444
    %v478 = vadd.f32 %v284, %v383
    %v479 = vadd.f32 %v285, %v385
    %v480 = vadd.f32 %v286, %v387
    %v481 = vadd.f32 %v287, %v389
    %v482 = vadd.f32 %v288, %v391
    %v483 = vadd.f32 %v289, %v393
    %v484 = vadd.f32 %v290, %v395
    %v485 = vadd.f32 %v291, %v397
    %v486 = vadd.f32 %v292, %v399
    %v487 = vadd.f32 %v293, %v401
    %v488 = vadd.f32 %v294, %v403
    %v489 = vadd.f32 %v295, %v405
    %v490 = vadd.f32 %v296, %v407
    %v491 = vadd.f32 %v297, %v409
    %v492 = vadd.f32 %v298, %v411
    %v493 = vadd.f32 %v299, %v413
    %v494 = vadd.f32 %v300, %v415
    %v495 = vadd.f32 %v301, %v417
    %v496 = vadd.f32 %v302, %v419
    %v497 = vadd.f32 %v303, %v421
    %v498 = vadd.f32 %v304, %v423
    %v499 = vadd.f32 %v305, %v425
    %v500 = vadd.f32 %v306, %v427
    %v501 = vadd.f32 %v307, %v429
    %v502 = vadd.f32 %v308, %v431
    %v503 = vadd.f32 %v309, %v433
    %v504 = vadd.f32 %v310, %v435
    %v505 = vadd.f32 %v311, %v437
    %v506 = vadd.f32 %v312, %v439
    %v507 = vadd.f32 %v313, %v441
    %v508 = vadd.f32 %v314, %v443
    %v509 = vadd.f32 %v315, %v445
    %s510 = sld [smem:[#allocation2 + $0x3]]
    %v511 = vstv %s510
    %v512 = vmul.f32 %v511, %v24
    %v513 = vmul.f32 %v511, %v25
    %v514 = vmul.f32 %v511, %v26
    %v515 = vmul.f32 %v511, %v27
    %v516 = vmul.f32 %v511, %v28
    %v517 = vmul.f32 %v511, %v29
    %v518 = vmul.f32 %v511, %v30
    %v519 = vmul.f32 %v511, %v31
    %v520 = vmul.f32 %v511, %v32
    %v521 = vmul.f32 %v511, %v33
    %v522 = vmul.f32 %v511, %v34
    %v523 = vmul.f32 %v511, %v35
    %v524 = vmul.f32 %v511, %v36
    %v525 = vmul.f32 %v511, %v37
    %v526 = vmul.f32 %v511, %v38
    %v527 = vmul.f32 %v511, %v39
    %v528 = vmul.f32 %v511, %v40
    %v529 = vmul.f32 %v511, %v41
    %v530 = vmul.f32 %v511, %v42
    %v531 = vmul.f32 %v511, %v43
    %v532 = vmul.f32 %v511, %v44
    %v533 = vmul.f32 %v511, %v45
    %v534 = vmul.f32 %v511, %v46
    %v535 = vmul.f32 %v511, %v47
    %v536 = vmul.f32 %v511, %v48
    %v537 = vmul.f32 %v511, %v49
    %v538 = vmul.f32 %v511, %v50
    %v539 = vmul.f32 %v511, %v51
    %v540 = vmul.f32 %v511, %v52
    %v541 = vmul.f32 %v511, %v53
    %v542 = vmul.f32 %v511, %v54
    %v543 = vmul.f32 %v511, %v55
    %vm576 = vcmask 1046528
    %v577 = vrot.slane %v512, 1
    %v578 = vrot.slane %v513, 1
    %v579 = vsel %vm576, %v577, %v578
    %v580 = vrot.slane %v514, 1
    %v581 = vsel %vm576, %v578, %v580
    %v582 = vrot.slane %v515, 1
    %v583 = vsel %vm576, %v580, %v582
    %v584 = vrot.slane %v516, 1
    %v585 = vrot.slane %v517, 1
    %v586 = vsel %vm576, %v584, %v585
    %v587 = vrot.slane %v518, 1
    %v588 = vsel %vm576, %v585, %v587
    %v589 = vrot.slane %v519, 1
    %v590 = vsel %vm576, %v587, %v589
    %v591 = vrot.slane %v520, 1
    %v592 = vrot.slane %v521, 1
    %v593 = vsel %vm576, %v591, %v592
    %v594 = vrot.slane %v522, 1
    %v595 = vsel %vm576, %v592, %v594
    %v596 = vrot.slane %v523, 1
    %v597 = vsel %vm576, %v594, %v596
    %v598 = vrot.slane %v524, 1
    %v599 = vrot.slane %v525, 1
    %v600 = vsel %vm576, %v598, %v599
    %v601 = vrot.slane %v526, 1
    %v602 = vsel %vm576, %v599, %v601
    %v603 = vrot.slane %v527, 1
    %v604 = vsel %vm576, %v601, %v603
    %v605 = vrot.slane %v528, 1
    %v606 = vrot.slane %v529, 1
    %v607 = vsel %vm576, %v605, %v606
    %v608 = vrot.slane %v530, 1
    %v609 = vsel %vm576, %v606, %v608
    %v610 = vrot.slane %v531, 1
    %v611 = vsel %vm576, %v608, %v610
    %v612 = vrot.slane %v532, 1
    %v613 = vrot.slane %v533, 1
    %v614 = vsel %vm576, %v612, %v613
    %v615 = vrot.slane %v534, 1
    %v616 = vsel %vm576, %v613, %v615
    %v617 = vrot.slane %v535, 1
    %v618 = vsel %vm576, %v615, %v617
    %v619 = vrot.slane %v536, 1
    %v620 = vrot.slane %v537, 1
    %v621 = vsel %vm576, %v619, %v620
    %v622 = vrot.slane %v538, 1
    %v623 = vsel %vm576, %v620, %v622
    %v624 = vrot.slane %v539, 1
    %v625 = vsel %vm576, %v622, %v624
    %v626 = vrot.slane %v540, 1
    %v627 = vrot.slane %v541, 1
    %v628 = vsel %vm576, %v626, %v627
    %v629 = vrot.slane %v542, 1
    %v630 = vsel %vm576, %v627, %v629
    %v631 = vrot.slane %v543, 1
    %v632 = vsel %vm576, %v629, %v631
    %v665 = vadd.f32 %v478, %v579
    %v666 = vadd.f32 %v479, %v581
    %v667 = vadd.f32 %v480, %v583
    %v668 = vadd.f32 %v481, %v582
    %v669 = vadd.f32 %v482, %v586
    %v670 = vadd.f32 %v483, %v588
    %v671 = vadd.f32 %v484, %v590
    %v672 = vadd.f32 %v485, %v589
    %v673 = vadd.f32 %v486, %v593
    %v674 = vadd.f32 %v487, %v595
    %v675 = vadd.f32 %v488, %v597
    %v676 = vadd.f32 %v489, %v596
    %v677 = vadd.f32 %v490, %v600
    %v678 = vadd.f32 %v491, %v602
    %v679 = vadd.f32 %v492, %v604
    %v680 = vadd.f32 %v493, %v603
    %v681 = vadd.f32 %v494, %v607
    %v682 = vadd.f32 %v495, %v609
    %v683 = vadd.f32 %v496, %v611
    %v684 = vadd.f32 %v497, %v610
    %v685 = vadd.f32 %v498, %v614
    %v686 = vadd.f32 %v499, %v616
    %v687 = vadd.f32 %v500, %v618
    %v688 = vadd.f32 %v501, %v617
    %v689 = vadd.f32 %v502, %v621
    %v690 = vadd.f32 %v503, %v623
    %v691 = vadd.f32 %v504, %v625
    %v692 = vadd.f32 %v505, %v624
    %v693 = vadd.f32 %v506, %v628
    %v694 = vadd.f32 %v507, %v630
    %v695 = vadd.f32 %v508, %v632
    %v696 = vadd.f32 %v509, %v631
    %s697 = sld [smem:[#allocation2 + $0x4]]
    %v698 = vstv %s697
    %v699 = vmul.f32 %v698, %v24
    %v700 = vmul.f32 %v698, %v25
    %v701 = vmul.f32 %v698, %v26
    %v702 = vmul.f32 %v698, %v27
    %v703 = vmul.f32 %v698, %v28
    %v704 = vmul.f32 %v698, %v29
    %v705 = vmul.f32 %v698, %v30
    %v706 = vmul.f32 %v698, %v31
    %v707 = vmul.f32 %v698, %v32
    %v708 = vmul.f32 %v698, %v33
    %v709 = vmul.f32 %v698, %v34
    %v710 = vmul.f32 %v698, %v35
    %v711 = vmul.f32 %v698, %v36
    %v712 = vmul.f32 %v698, %v37
    %v713 = vmul.f32 %v698, %v38
    %v714 = vmul.f32 %v698, %v39
    %v715 = vmul.f32 %v698, %v40
    %v716 = vmul.f32 %v698, %v41
    %v717 = vmul.f32 %v698, %v42
    %v718 = vmul.f32 %v698, %v43
    %v719 = vmul.f32 %v698, %v44
    %v720 = vmul.f32 %v698, %v45
    %v721 = vmul.f32 %v698, %v46
    %v722 = vmul.f32 %v698, %v47
    %v723 = vmul.f32 %v698, %v48
    %v724 = vmul.f32 %v698, %v49
    %v725 = vmul.f32 %v698, %v50
    %v726 = vmul.f32 %v698, %v51
    %v727 = vmul.f32 %v698, %v52
    %v728 = vmul.f32 %v698, %v53
    %v729 = vmul.f32 %v698, %v54
    %v730 = vmul.f32 %v698, %v55
    %v763 = vrot.slane %v699, 1
    %v764 = vrot.slane %v700, 1
    %v765 = vsel %vm576, %v763, %v764
    %v766 = vrot.slane %v701, 1
    %v767 = vsel %vm576, %v764, %v766
    %v768 = vrot.slane %v702, 1
    %v769 = vsel %vm576, %v766, %v768
    %v770 = vrot.slane %v703, 1
    %v771 = vrot.slane %v704, 1
    %v772 = vsel %vm576, %v770, %v771
    %v773 = vrot.slane %v705, 1
    %v774 = vsel %vm576, %v771, %v773
    %v775 = vrot.slane %v706, 1
    %v776 = vsel %vm576, %v773, %v775
    %v777 = vrot.slane %v707, 1
    %v778 = vrot.slane %v708, 1
    %v779 = vsel %vm576, %v777, %v778
    %v780 = vrot.slane %v709, 1
    %v781 = vsel %vm576, %v778, %v780
    %v782 = vrot.slane %v710, 1
    %v783 = vsel %vm576, %v780, %v782
    %v784 = vrot.slane %v711, 1
    %v785 = vrot.slane %v712, 1
    %v786 = vsel %vm576, %v784, %v785
    %v787 = vrot.slane %v713, 1
    %v788 = vsel %vm576, %v785, %v787
    %v789 = vrot.slane %v714, 1
    %v790 = vsel %vm576, %v787, %v789
    %v791 = vrot.slane %v715, 1
    %v792 = vrot.slane %v716, 1
    %v793 = vsel %vm576, %v791, %v792
    %v794 = vrot.slane %v717, 1
    %v795 = vsel %vm576, %v792, %v794
    %v796 = vrot.slane %v718, 1
    %v797 = vsel %vm576, %v794, %v796
    %v798 = vrot.slane %v719, 1
    %v799 = vrot.slane %v720, 1
    %v800 = vsel %vm576, %v798, %v799
    %v801 = vrot.slane %v721, 1
    %v802 = vsel %vm576, %v799, %v801
    %v803 = vrot.slane %v722, 1
    %v804 = vsel %vm576, %v801, %v803
    %v805 = vrot.slane %v723, 1
    %v806 = vrot.slane %v724, 1
    %v807 = vsel %vm576, %v805, %v806
    %v808 = vrot.slane %v725, 1
    %v809 = vsel %vm576, %v806, %v808
    %v810 = vrot.slane %v726, 1
    %v811 = vsel %vm576, %v808, %v810
    %v812 = vrot.slane %v727, 1
    %v813 = vrot.slane %v728, 1
    %v814 = vsel %vm576, %v812, %v813
    %v815 = vrot.slane %v729, 1
    %v816 = vsel %vm576, %v813, %v815
    %v817 = vrot.slane %v730, 1
    %v818 = vsel %vm576, %v815, %v817
    %819 = vrot.lane.b32.xlu0 %v765, 127
    %v820 = vpop.permute.xlu0 %819
    %821 = vrot.lane.b32.xlu0 %v767, 127
    %v822 = vpop.permute.xlu0 %821
    %823 = vrot.lane.b32.xlu0 %v769, 127
    %v824 = vpop.permute.xlu0 %823
    %825 = vrot.lane.b32.xlu0 %v768, 127
    %v826 = vpop.permute.xlu0 %825
    %827 = vrot.lane.b32.xlu0 %v772, 127
    %v828 = vpop.permute.xlu0 %827
    %829 = vrot.lane.b32.xlu0 %v774, 127
    %v830 = vpop.permute.xlu0 %829
    %831 = vrot.lane.b32.xlu0 %v776, 127
    %v832 = vpop.permute.xlu0 %831
    %833 = vrot.lane.b32.xlu0 %v775, 127
    %v834 = vpop.permute.xlu0 %833
    %835 = vrot.lane.b32.xlu0 %v779, 127
    %v836 = vpop.permute.xlu0 %835
    %837 = vrot.lane.b32.xlu0 %v781, 127
    %v838 = vpop.permute.xlu0 %837
    %839 = vrot.lane.b32.xlu0 %v783, 127
    %v840 = vpop.permute.xlu0 %839
    %841 = vrot.lane.b32.xlu0 %v782, 127
    %v842 = vpop.permute.xlu0 %841
    %843 = vrot.lane.b32.xlu0 %v786, 127
    %v844 = vpop.permute.xlu0 %843
    %845 = vrot.lane.b32.xlu0 %v788, 127
    %v846 = vpop.permute.xlu0 %845
    %847 = vrot.lane.b32.xlu0 %v790, 127
    %v848 = vpop.permute.xlu0 %847
    %849 = vrot.lane.b32.xlu0 %v789, 127
    %v850 = vpop.permute.xlu0 %849
    %851 = vrot.lane.b32.xlu0 %v793, 127
    %v852 = vpop.permute.xlu0 %851
    %853 = vrot.lane.b32.xlu0 %v795, 127
    %v854 = vpop.permute.xlu0 %853
    %855 = vrot.lane.b32.xlu0 %v797, 127
    %v856 = vpop.permute.xlu0 %855
    %857 = vrot.lane.b32.xlu0 %v796, 127
    %v858 = vpop.permute.xlu0 %857
    %859 = vrot.lane.b32.xlu0 %v800, 127
    %v860 = vpop.permute.xlu0 %859
    %861 = vrot.lane.b32.xlu0 %v802, 127
    %v862 = vpop.permute.xlu0 %861
    %863 = vrot.lane.b32.xlu0 %v804, 127
    %v864 = vpop.permute.xlu0 %863
    %865 = vrot.lane.b32.xlu0 %v803, 127
    %v866 = vpop.permute.xlu0 %865
    %867 = vrot.lane.b32.xlu0 %v807, 127
    %v868 = vpop.permute.xlu0 %867
    %869 = vrot.lane.b32.xlu0 %v809, 127
    %v870 = vpop.permute.xlu0 %869
    %871 = vrot.lane.b32.xlu0 %v811, 127
    %v872 = vpop.permute.xlu0 %871
    %873 = vrot.lane.b32.xlu0 %v810, 127
    %v874 = vpop.permute.xlu0 %873
    %875 = vrot.lane.b32.xlu0 %v814, 127
    %v876 = vpop.permute.xlu0 %875
    %877 = vrot.lane.b32.xlu0 %v816, 127
    %v878 = vpop.permute.xlu0 %877
    %879 = vrot.lane.b32.xlu0 %v818, 127
    %v880 = vpop.permute.xlu0 %879
    %881 = vrot.lane.b32.xlu0 %v817, 127
    %v882 = vpop.permute.xlu0 %881
    %v915 = vadd.f32 %v665, %v820
    %v916 = vadd.f32 %v666, %v822
    %v917 = vadd.f32 %v667, %v824
    %v918 = vadd.f32 %v668, %v826
    %v919 = vadd.f32 %v669, %v828
    %v920 = vadd.f32 %v670, %v830
    %v921 = vadd.f32 %v671, %v832
    %v922 = vadd.f32 %v672, %v834
    %v923 = vadd.f32 %v673, %v836
    %v924 = vadd.f32 %v674, %v838
    %v925 = vadd.f32 %v675, %v840
    %v926 = vadd.f32 %v676, %v842
    %v927 = vadd.f32 %v677, %v844
    %v928 = vadd.f32 %v678, %v846
    %v929 = vadd.f32 %v679, %v848
    %v930 = vadd.f32 %v680, %v850
    %v931 = vadd.f32 %v681, %v852
    %v932 = vadd.f32 %v682, %v854
    %v933 = vadd.f32 %v683, %v856
    %v934 = vadd.f32 %v684, %v858
    %v935 = vadd.f32 %v685, %v860
    %v936 = vadd.f32 %v686, %v862
    %v937 = vadd.f32 %v687, %v864
    %v938 = vadd.f32 %v688, %v866
    %v939 = vadd.f32 %v689, %v868
    %v940 = vadd.f32 %v690, %v870
    %v941 = vadd.f32 %v691, %v872
    %v942 = vadd.f32 %v692, %v874
    %v943 = vadd.f32 %v693, %v876
    %v944 = vadd.f32 %v694, %v878
    %v945 = vadd.f32 %v695, %v880
    %v946 = vadd.f32 %v696, %v882
    %s947 = sld [smem:[#allocation2 + $0x5]]
    %v948 = vstv %s947
    %v949 = vmul.f32 %v948, %v24
    %v950 = vmul.f32 %v948, %v25
    %v951 = vmul.f32 %v948, %v26
    %v952 = vmul.f32 %v948, %v27
    %v953 = vmul.f32 %v948, %v28
    %v954 = vmul.f32 %v948, %v29
    %v955 = vmul.f32 %v948, %v30
    %v956 = vmul.f32 %v948, %v31
    %v957 = vmul.f32 %v948, %v32
    %v958 = vmul.f32 %v948, %v33
    %v959 = vmul.f32 %v948, %v34
    %v960 = vmul.f32 %v948, %v35
    %v961 = vmul.f32 %v948, %v36
    %v962 = vmul.f32 %v948, %v37
    %v963 = vmul.f32 %v948, %v38
    %v964 = vmul.f32 %v948, %v39
    %v965 = vmul.f32 %v948, %v40
    %v966 = vmul.f32 %v948, %v41
    %v967 = vmul.f32 %v948, %v42
    %v968 = vmul.f32 %v948, %v43
    %v969 = vmul.f32 %v948, %v44
    %v970 = vmul.f32 %v948, %v45
    %v971 = vmul.f32 %v948, %v46
    %v972 = vmul.f32 %v948, %v47
    %v973 = vmul.f32 %v948, %v48
    %v974 = vmul.f32 %v948, %v49
    %v975 = vmul.f32 %v948, %v50
    %v976 = vmul.f32 %v948, %v51
    %v977 = vmul.f32 %v948, %v52
    %v978 = vmul.f32 %v948, %v53
    %v979 = vmul.f32 %v948, %v54
    %v980 = vmul.f32 %v948, %v55
    %v1013 = vrot.slane %v949, 1
    %v1014 = vrot.slane %v950, 1
    %v1015 = vsel %vm576, %v1013, %v1014
    %v1016 = vrot.slane %v951, 1
    %v1017 = vsel %vm576, %v1014, %v1016
    %v1018 = vrot.slane %v952, 1
    %v1019 = vsel %vm576, %v1016, %v1018
    %v1020 = vrot.slane %v953, 1
    %v1021 = vrot.slane %v954, 1
    %v1022 = vsel %vm576, %v1020, %v1021
    %v1023 = vrot.slane %v955, 1
    %v1024 = vsel %vm576, %v1021, %v1023
    %v1025 = vrot.slane %v956, 1
    %v1026 = vsel %vm576, %v1023, %v1025
    %v1027 = vrot.slane %v957, 1
    %v1028 = vrot.slane %v958, 1
    %v1029 = vsel %vm576, %v1027, %v1028
    %v1030 = vrot.slane %v959, 1
    %v1031 = vsel %vm576, %v1028, %v1030
    %v1032 = vrot.slane %v960, 1
    %v1033 = vsel %vm576, %v1030, %v1032
    %v1034 = vrot.slane %v961, 1
    %v1035 = vrot.slane %v962, 1
    %v1036 = vsel %vm576, %v1034, %v1035
    %v1037 = vrot.slane %v963, 1
    %v1038 = vsel %vm576, %v1035, %v1037
    %v1039 = vrot.slane %v964, 1
    %v1040 = vsel %vm576, %v1037, %v1039
    %v1041 = vrot.slane %v965, 1
    %v1042 = vrot.slane %v966, 1
    %v1043 = vsel %vm576, %v1041, %v1042
    %v1044 = vrot.slane %v967, 1
    %v1045 = vsel %vm576, %v1042, %v1044
    %v1046 = vrot.slane %v968, 1
    %v1047 = vsel %vm576, %v1044, %v1046
    %v1048 = vrot.slane %v969, 1
    %v1049 = vrot.slane %v970, 1
    %v1050 = vsel %vm576, %v1048, %v1049
    %v1051 = vrot.slane %v971, 1
    %v1052 = vsel %vm576, %v1049, %v1051
    %v1053 = vrot.slane %v972, 1
    %v1054 = vsel %vm576, %v1051, %v1053
    %v1055 = vrot.slane %v973, 1
    %v1056 = vrot.slane %v974, 1
    %v1057 = vsel %vm576, %v1055, %v1056
    %v1058 = vrot.slane %v975, 1
    %v1059 = vsel %vm576, %v1056, %v1058
    %v1060 = vrot.slane %v976, 1
    %v1061 = vsel %vm576, %v1058, %v1060
    %v1062 = vrot.slane %v977, 1
    %v1063 = vrot.slane %v978, 1
    %v1064 = vsel %vm576, %v1062, %v1063
    %v1065 = vrot.slane %v979, 1
    %v1066 = vsel %vm576, %v1063, %v1065
    %v1067 = vrot.slane %v980, 1
    %v1068 = vsel %vm576, %v1065, %v1067
    %1069 = vrot.lane.b32.xlu0 %v1015, 126
    %v1070 = vpop.permute.xlu0 %1069
    %1071 = vrot.lane.b32.xlu0 %v1017, 126
    %v1072 = vpop.permute.xlu0 %1071
    %1073 = vrot.lane.b32.xlu0 %v1019, 126
    %v1074 = vpop.permute.xlu0 %1073
    %1075 = vrot.lane.b32.xlu0 %v1018, 126
    %v1076 = vpop.permute.xlu0 %1075
    %1077 = vrot.lane.b32.xlu0 %v1022, 126
    %v1078 = vpop.permute.xlu0 %1077
    %1079 = vrot.lane.b32.xlu0 %v1024, 126
    %v1080 = vpop.permute.xlu0 %1079
    %1081 = vrot.lane.b32.xlu0 %v1026, 126
    %v1082 = vpop.permute.xlu0 %1081
    %1083 = vrot.lane.b32.xlu0 %v1025, 126
    %v1084 = vpop.permute.xlu0 %1083
    %1085 = vrot.lane.b32.xlu0 %v1029, 126
    %v1086 = vpop.permute.xlu0 %1085
    %1087 = vrot.lane.b32.xlu0 %v1031, 126
    %v1088 = vpop.permute.xlu0 %1087
    %1089 = vrot.lane.b32.xlu0 %v1033, 126
    %v1090 = vpop.permute.xlu0 %1089
    %1091 = vrot.lane.b32.xlu0 %v1032, 126
    %v1092 = vpop.permute.xlu0 %1091
    %1093 = vrot.lane.b32.xlu0 %v1036, 126
    %v1094 = vpop.permute.xlu0 %1093
    %1095 = vrot.lane.b32.xlu0 %v1038, 126
    %v1096 = vpop.permute.xlu0 %1095
    %1097 = vrot.lane.b32.xlu0 %v1040, 126
    %v1098 = vpop.permute.xlu0 %1097
    %1099 = vrot.lane.b32.xlu0 %v1039, 126
    %v1100 = vpop.permute.xlu0 %1099
    %1101 = vrot.lane.b32.xlu0 %v1043, 126
    %v1102 = vpop.permute.xlu0 %1101
    %1103 = vrot.lane.b32.xlu0 %v1045, 126
    %v1104 = vpop.permute.xlu0 %1103
    %1105 = vrot.lane.b32.xlu0 %v1047, 126
    %v1106 = vpop.permute.xlu0 %1105
    %1107 = vrot.lane.b32.xlu0 %v1046, 126
    %v1108 = vpop.permute.xlu0 %1107
    %1109 = vrot.lane.b32.xlu0 %v1050, 126
    %v1110 = vpop.permute.xlu0 %1109
    %1111 = vrot.lane.b32.xlu0 %v1052, 126
    %v1112 = vpop.permute.xlu0 %1111
    %1113 = vrot.lane.b32.xlu0 %v1054, 126
    %v1114 = vpop.permute.xlu0 %1113
    %1115 = vrot.lane.b32.xlu0 %v1053, 126
    %v1116 = vpop.permute.xlu0 %1115
    %1117 = vrot.lane.b32.xlu0 %v1057, 126
    %v1118 = vpop.permute.xlu0 %1117
    %1119 = vrot.lane.b32.xlu0 %v1059, 126
    %v1120 = vpop.permute.xlu0 %1119
    %1121 = vrot.lane.b32.xlu0 %v1061, 126
    %v1122 = vpop.permute.xlu0 %1121
    %1123 = vrot.lane.b32.xlu0 %v1060, 126
    %v1124 = vpop.permute.xlu0 %1123
    %1125 = vrot.lane.b32.xlu0 %v1064, 126
    %v1126 = vpop.permute.xlu0 %1125
    %1127 = vrot.lane.b32.xlu0 %v1066, 126
    %v1128 = vpop.permute.xlu0 %1127
    %1129 = vrot.lane.b32.xlu0 %v1068, 126
    %v1130 = vpop.permute.xlu0 %1129
    %1131 = vrot.lane.b32.xlu0 %v1067, 126
    %v1132 = vpop.permute.xlu0 %1131
    %v1165 = vadd.f32 %v915, %v1070
    %v1166 = vadd.f32 %v916, %v1072
    %v1167 = vadd.f32 %v917, %v1074
    %v1168 = vadd.f32 %v918, %v1076
    %v1169 = vadd.f32 %v919, %v1078
    %v1170 = vadd.f32 %v920, %v1080
    %v1171 = vadd.f32 %v921, %v1082
    %v1172 = vadd.f32 %v922, %v1084
    %v1173 = vadd.f32 %v923, %v1086
    %v1174 = vadd.f32 %v924, %v1088
    %v1175 = vadd.f32 %v925, %v1090
    %v1176 = vadd.f32 %v926, %v1092
    %v1177 = vadd.f32 %v927, %v1094
    %v1178 = vadd.f32 %v928, %v1096
    %v1179 = vadd.f32 %v929, %v1098
    %v1180 = vadd.f32 %v930, %v1100
    %v1181 = vadd.f32 %v931, %v1102
    %v1182 = vadd.f32 %v932, %v1104
    %v1183 = vadd.f32 %v933, %v1106
    %v1184 = vadd.f32 %v934, %v1108
    %v1185 = vadd.f32 %v935, %v1110
    %v1186 = vadd.f32 %v936, %v1112
    %v1187 = vadd.f32 %v937, %v1114
    %v1188 = vadd.f32 %v938, %v1116
    %v1189 = vadd.f32 %v939, %v1118
    %v1190 = vadd.f32 %v940, %v1120
    %v1191 = vadd.f32 %v941, %v1122
    %v1192 = vadd.f32 %v942, %v1124
    %v1193 = vadd.f32 %v943, %v1126
    %v1194 = vadd.f32 %v944, %v1128
    %v1195 = vadd.f32 %v945, %v1130
    %v1196 = vadd.f32 %v946, %v1132
    %s1197 = sld [smem:[#allocation2 + $0x6]]
    %v1198 = vstv %s1197
    %v1199 = vmul.f32 %v1198, %v24
    %v1200 = vmul.f32 %v1198, %v25
    %v1201 = vmul.f32 %v1198, %v26
    %v1202 = vmul.f32 %v1198, %v27
    %v1203 = vmul.f32 %v1198, %v28
    %v1204 = vmul.f32 %v1198, %v29
    %v1205 = vmul.f32 %v1198, %v30
    %v1206 = vmul.f32 %v1198, %v31
    %v1207 = vmul.f32 %v1198, %v32
    %v1208 = vmul.f32 %v1198, %v33
    %v1209 = vmul.f32 %v1198, %v34
    %v1210 = vmul.f32 %v1198, %v35
    %v1211 = vmul.f32 %v1198, %v36
    %v1212 = vmul.f32 %v1198, %v37
    %v1213 = vmul.f32 %v1198, %v38
    %v1214 = vmul.f32 %v1198, %v39
    %v1215 = vmul.f32 %v1198, %v40
    %v1216 = vmul.f32 %v1198, %v41
    %v1217 = vmul.f32 %v1198, %v42
    %v1218 = vmul.f32 %v1198, %v43
    %v1219 = vmul.f32 %v1198, %v44
    %v1220 = vmul.f32 %v1198, %v45
    %v1221 = vmul.f32 %v1198, %v46
    %v1222 = vmul.f32 %v1198, %v47
    %v1223 = vmul.f32 %v1198, %v48
    %v1224 = vmul.f32 %v1198, %v49
    %v1225 = vmul.f32 %v1198, %v50
    %v1226 = vmul.f32 %v1198, %v51
    %v1227 = vmul.f32 %v1198, %v52
    %v1228 = vmul.f32 %v1198, %v53
    %v1229 = vmul.f32 %v1198, %v54
    %v1230 = vmul.f32 %v1198, %v55
    %vm1263 = vcmask 1045504
    %v1264 = vrot.slane %v1199, 2
    %v1265 = vrot.slane %v1200, 2
    %v1266 = vsel %vm1263, %v1264, %v1265
    %v1267 = vrot.slane %v1201, 2
    %v1268 = vsel %vm1263, %v1265, %v1267
    %v1269 = vrot.slane %v1202, 2
    %v1270 = vsel %vm1263, %v1267, %v1269
    %v1271 = vrot.slane %v1203, 2
    %v1272 = vrot.slane %v1204, 2
    %v1273 = vsel %vm1263, %v1271, %v1272
    %v1274 = vrot.slane %v1205, 2
    %v1275 = vsel %vm1263, %v1272, %v1274
    %v1276 = vrot.slane %v1206, 2
    %v1277 = vsel %vm1263, %v1274, %v1276
    %v1278 = vrot.slane %v1207, 2
    %v1279 = vrot.slane %v1208, 2
    %v1280 = vsel %vm1263, %v1278, %v1279
    %v1281 = vrot.slane %v1209, 2
    %v1282 = vsel %vm1263, %v1279, %v1281
    %v1283 = vrot.slane %v1210, 2
    %v1284 = vsel %vm1263, %v1281, %v1283
    %v1285 = vrot.slane %v1211, 2
    %v1286 = vrot.slane %v1212, 2
    %v1287 = vsel %vm1263, %v1285, %v1286
    %v1288 = vrot.slane %v1213, 2
    %v1289 = vsel %vm1263, %v1286, %v1288
    %v1290 = vrot.slane %v1214, 2
    %v1291 = vsel %vm1263, %v1288, %v1290
    %v1292 = vrot.slane %v1215, 2
    %v1293 = vrot.slane %v1216, 2
    %v1294 = vsel %vm1263, %v1292, %v1293
    %v1295 = vrot.slane %v1217, 2
    %v1296 = vsel %vm1263, %v1293, %v1295
    %v1297 = vrot.slane %v1218, 2
    %v1298 = vsel %vm1263, %v1295, %v1297
    %v1299 = vrot.slane %v1219, 2
    %v1300 = vrot.slane %v1220, 2
    %v1301 = vsel %vm1263, %v1299, %v1300
    %v1302 = vrot.slane %v1221, 2
    %v1303 = vsel %vm1263, %v1300, %v1302
    %v1304 = vrot.slane %v1222, 2
    %v1305 = vsel %vm1263, %v1302, %v1304
    %v1306 = vrot.slane %v1223, 2
    %v1307 = vrot.slane %v1224, 2
    %v1308 = vsel %vm1263, %v1306, %v1307
    %v1309 = vrot.slane %v1225, 2
    %v1310 = vsel %vm1263, %v1307, %v1309
    %v1311 = vrot.slane %v1226, 2
    %v1312 = vsel %vm1263, %v1309, %v1311
    %v1313 = vrot.slane %v1227, 2
    %v1314 = vrot.slane %v1228, 2
    %v1315 = vsel %vm1263, %v1313, %v1314
    %v1316 = vrot.slane %v1229, 2
    %v1317 = vsel %vm1263, %v1314, %v1316
    %v1318 = vrot.slane %v1230, 2
    %v1319 = vsel %vm1263, %v1316, %v1318
    %v1352 = vadd.f32 %v1165, %v1266
    %v1353 = vadd.f32 %v1166, %v1268
    %v1354 = vadd.f32 %v1167, %v1270
    %v1355 = vadd.f32 %v1168, %v1269
    %v1356 = vadd.f32 %v1169, %v1273
    %v1357 = vadd.f32 %v1170, %v1275
    %v1358 = vadd.f32 %v1171, %v1277
    %v1359 = vadd.f32 %v1172, %v1276
    %v1360 = vadd.f32 %v1173, %v1280
    %v1361 = vadd.f32 %v1174, %v1282
    %v1362 = vadd.f32 %v1175, %v1284
    %v1363 = vadd.f32 %v1176, %v1283
    %v1364 = vadd.f32 %v1177, %v1287
    %v1365 = vadd.f32 %v1178, %v1289
    %v1366 = vadd.f32 %v1179, %v1291
    %v1367 = vadd.f32 %v1180, %v1290
    %v1368 = vadd.f32 %v1181, %v1294
    %v1369 = vadd.f32 %v1182, %v1296
    %v1370 = vadd.f32 %v1183, %v1298
    %v1371 = vadd.f32 %v1184, %v1297
    %v1372 = vadd.f32 %v1185, %v1301
    %v1373 = vadd.f32 %v1186, %v1303
    %v1374 = vadd.f32 %v1187, %v1305
    %v1375 = vadd.f32 %v1188, %v1304
    %v1376 = vadd.f32 %v1189, %v1308
    %v1377 = vadd.f32 %v1190, %v1310
    %v1378 = vadd.f32 %v1191, %v1312
    %v1379 = vadd.f32 %v1192, %v1311
    %v1380 = vadd.f32 %v1193, %v1315
    %v1381 = vadd.f32 %v1194, %v1317
    %v1382 = vadd.f32 %v1195, %v1319
    %v1383 = vadd.f32 %v1196, %v1318
    %s1384 = sld [smem:[#allocation2 + $0x7]]
    %v1385 = vstv %s1384
    %v1386 = vmul.f32 %v1385, %v24
    %v1387 = vmul.f32 %v1385, %v25
    %v1388 = vmul.f32 %v1385, %v26
    %v1389 = vmul.f32 %v1385, %v27
    %v1390 = vmul.f32 %v1385, %v28
    %v1391 = vmul.f32 %v1385, %v29
    %v1392 = vmul.f32 %v1385, %v30
    %v1393 = vmul.f32 %v1385, %v31
    %v1394 = vmul.f32 %v1385, %v32
    %v1395 = vmul.f32 %v1385, %v33
    %v1396 = vmul.f32 %v1385, %v34
    %v1397 = vmul.f32 %v1385, %v35
    %v1398 = vmul.f32 %v1385, %v36
    %v1399 = vmul.f32 %v1385, %v37
    %v1400 = vmul.f32 %v1385, %v38
    %v1401 = vmul.f32 %v1385, %v39
    %v1402 = vmul.f32 %v1385, %v40
    %v1403 = vmul.f32 %v1385, %v41
    %v1404 = vmul.f32 %v1385, %v42
    %v1405 = vmul.f32 %v1385, %v43
    %v1406 = vmul.f32 %v1385, %v44
    %v1407 = vmul.f32 %v1385, %v45
    %v1408 = vmul.f32 %v1385, %v46
    %v1409 = vmul.f32 %v1385, %v47
    %v1410 = vmul.f32 %v1385, %v48
    %v1411 = vmul.f32 %v1385, %v49
    %v1412 = vmul.f32 %v1385, %v50
    %v1413 = vmul.f32 %v1385, %v51
    %v1414 = vmul.f32 %v1385, %v52
    %v1415 = vmul.f32 %v1385, %v53
    %v1416 = vmul.f32 %v1385, %v54
    %v1417 = vmul.f32 %v1385, %v55
    %v1450 = vrot.slane %v1386, 2
    %v1451 = vrot.slane %v1387, 2
    %v1452 = vsel %vm1263, %v1450, %v1451
    %v1453 = vrot.slane %v1388, 2
    %v1454 = vsel %vm1263, %v1451, %v1453
    %v1455 = vrot.slane %v1389, 2
    %v1456 = vsel %vm1263, %v1453, %v1455
    %v1457 = vrot.slane %v1390, 2
    %v1458 = vrot.slane %v1391, 2
    %v1459 = vsel %vm1263, %v1457, %v1458
    %v1460 = vrot.slane %v1392, 2
    %v1461 = vsel %vm1263, %v1458, %v1460
    %v1462 = vrot.slane %v1393, 2
    %v1463 = vsel %vm1263, %v1460, %v1462
    %v1464 = vrot.slane %v1394, 2
    %v1465 = vrot.slane %v1395, 2
    %v1466 = vsel %vm1263, %v1464, %v1465
    %v1467 = vrot.slane %v1396, 2
    %v1468 = vsel %vm1263, %v1465, %v1467
    %v1469 = vrot.slane %v1397, 2
    %v1470 = vsel %vm1263, %v1467, %v1469
    %v1471 = vrot.slane %v1398, 2
    %v1472 = vrot.slane %v1399, 2
    %v1473 = vsel %vm1263, %v1471, %v1472
    %v1474 = vrot.slane %v1400, 2
    %v1475 = vsel %vm1263, %v1472, %v1474
    %v1476 = vrot.slane %v1401, 2
    %v1477 = vsel %vm1263, %v1474, %v1476
    %v1478 = vrot.slane %v1402, 2
    %v1479 = vrot.slane %v1403, 2
    %v1480 = vsel %vm1263, %v1478, %v1479
    %v1481 = vrot.slane %v1404, 2
    %v1482 = vsel %vm1263, %v1479, %v1481
    %v1483 = vrot.slane %v1405, 2
    %v1484 = vsel %vm1263, %v1481, %v1483
    %v1485 = vrot.slane %v1406, 2
    %v1486 = vrot.slane %v1407, 2
    %v1487 = vsel %vm1263, %v1485, %v1486
    %v1488 = vrot.slane %v1408, 2
    %v1489 = vsel %vm1263, %v1486, %v1488
    %v1490 = vrot.slane %v1409, 2
    %v1491 = vsel %vm1263, %v1488, %v1490
    %v1492 = vrot.slane %v1410, 2
    %v1493 = vrot.slane %v1411, 2
    %v1494 = vsel %vm1263, %v1492, %v1493
    %v1495 = vrot.slane %v1412, 2
    %v1496 = vsel %vm1263, %v1493, %v1495
    %v1497 = vrot.slane %v1413, 2
    %v1498 = vsel %vm1263, %v1495, %v1497
    %v1499 = vrot.slane %v1414, 2
    %v1500 = vrot.slane %v1415, 2
    %v1501 = vsel %vm1263, %v1499, %v1500
    %v1502 = vrot.slane %v1416, 2
    %v1503 = vsel %vm1263, %v1500, %v1502
    %v1504 = vrot.slane %v1417, 2
    %v1505 = vsel %vm1263, %v1502, %v1504
    %1506 = vrot.lane.b32.xlu0 %v1452, 127
    %v1507 = vpop.permute.xlu0 %1506
    %1508 = vrot.lane.b32.xlu0 %v1454, 127
    %v1509 = vpop.permute.xlu0 %1508
    %1510 = vrot.lane.b32.xlu0 %v1456, 127
    %v1511 = vpop.permute.xlu0 %1510
    %1512 = vrot.lane.b32.xlu0 %v1455, 127
    %v1513 = vpop.permute.xlu0 %1512
    %1514 = vrot.lane.b32.xlu0 %v1459, 127
    %v1515 = vpop.permute.xlu0 %1514
    %1516 = vrot.lane.b32.xlu0 %v1461, 127
    %v1517 = vpop.permute.xlu0 %1516
    %1518 = vrot.lane.b32.xlu0 %v1463, 127
    %v1519 = vpop.permute.xlu0 %1518
    %1520 = vrot.lane.b32.xlu0 %v1462, 127
    %v1521 = vpop.permute.xlu0 %1520
    %1522 = vrot.lane.b32.xlu0 %v1466, 127
    %v1523 = vpop.permute.xlu0 %1522
    %1524 = vrot.lane.b32.xlu0 %v1468, 127
    %v1525 = vpop.permute.xlu0 %1524
    %1526 = vrot.lane.b32.xlu0 %v1470, 127
    %v1527 = vpop.permute.xlu0 %1526
    %1528 = vrot.lane.b32.xlu0 %v1469, 127
    %v1529 = vpop.permute.xlu0 %1528
    %1530 = vrot.lane.b32.xlu0 %v1473, 127
    %v1531 = vpop.permute.xlu0 %1530
    %1532 = vrot.lane.b32.xlu0 %v1475, 127
    %v1533 = vpop.permute.xlu0 %1532
    %1534 = vrot.lane.b32.xlu0 %v1477, 127
    %v1535 = vpop.permute.xlu0 %1534
    %1536 = vrot.lane.b32.xlu0 %v1476, 127
    %v1537 = vpop.permute.xlu0 %1536
    %1538 = vrot.lane.b32.xlu0 %v1480, 127
    %v1539 = vpop.permute.xlu0 %1538
    %1540 = vrot.lane.b32.xlu0 %v1482, 127
    %v1541 = vpop.permute.xlu0 %1540
    %1542 = vrot.lane.b32.xlu0 %v1484, 127
    %v1543 = vpop.permute.xlu0 %1542
    %1544 = vrot.lane.b32.xlu0 %v1483, 127
    %v1545 = vpop.permute.xlu0 %1544
    %1546 = vrot.lane.b32.xlu0 %v1487, 127
    %v1547 = vpop.permute.xlu0 %1546
    %1548 = vrot.lane.b32.xlu0 %v1489, 127
    %v1549 = vpop.permute.xlu0 %1548
    %1550 = vrot.lane.b32.xlu0 %v1491, 127
    %v1551 = vpop.permute.xlu0 %1550
    %1552 = vrot.lane.b32.xlu0 %v1490, 127
    %v1553 = vpop.permute.xlu0 %1552
    %1554 = vrot.lane.b32.xlu0 %v1494, 127
    %v1555 = vpop.permute.xlu0 %1554
    %1556 = vrot.lane.b32.xlu0 %v1496, 127
    %v1557 = vpop.permute.xlu0 %1556
    %1558 = vrot.lane.b32.xlu0 %v1498, 127
    %v1559 = vpop.permute.xlu0 %1558
    %1560 = vrot.lane.b32.xlu0 %v1497, 127
    %v1561 = vpop.permute.xlu0 %1560
    %1562 = vrot.lane.b32.xlu0 %v1501, 127
    %v1563 = vpop.permute.xlu0 %1562
    %1564 = vrot.lane.b32.xlu0 %v1503, 127
    %v1565 = vpop.permute.xlu0 %1564
    %1566 = vrot.lane.b32.xlu0 %v1505, 127
    %v1567 = vpop.permute.xlu0 %1566
    %1568 = vrot.lane.b32.xlu0 %v1504, 127
    %v1569 = vpop.permute.xlu0 %1568
    %v1602 = vadd.f32 %v1352, %v1507
    %v1603 = vadd.f32 %v1353, %v1509
    %v1604 = vadd.f32 %v1354, %v1511
    %v1605 = vadd.f32 %v1355, %v1513
    %v1606 = vadd.f32 %v1356, %v1515
    %v1607 = vadd.f32 %v1357, %v1517
    %v1608 = vadd.f32 %v1358, %v1519
    %v1609 = vadd.f32 %v1359, %v1521
    %v1610 = vadd.f32 %v1360, %v1523
    %v1611 = vadd.f32 %v1361, %v1525
    %v1612 = vadd.f32 %v1362, %v1527
    %v1613 = vadd.f32 %v1363, %v1529
    %v1614 = vadd.f32 %v1364, %v1531
    %v1615 = vadd.f32 %v1365, %v1533
    %v1616 = vadd.f32 %v1366, %v1535
    %v1617 = vadd.f32 %v1367, %v1537
    %v1618 = vadd.f32 %v1368, %v1539
    %v1619 = vadd.f32 %v1369, %v1541
    %v1620 = vadd.f32 %v1370, %v1543
    %v1621 = vadd.f32 %v1371, %v1545
    %v1622 = vadd.f32 %v1372, %v1547
    %v1623 = vadd.f32 %v1373, %v1549
    %v1624 = vadd.f32 %v1374, %v1551
    %v1625 = vadd.f32 %v1375, %v1553
    %v1626 = vadd.f32 %v1376, %v1555
    %v1627 = vadd.f32 %v1377, %v1557
    %v1628 = vadd.f32 %v1378, %v1559
    %v1629 = vadd.f32 %v1379, %v1561
    %v1630 = vadd.f32 %v1380, %v1563
    %v1631 = vadd.f32 %v1381, %v1565
    %v1632 = vadd.f32 %v1382, %v1567
    %v1633 = vadd.f32 %v1383, %v1569
    %s1634 = sld [smem:[#allocation2 + $0x8]]
    %v1635 = vstv %s1634
    %v1636 = vmul.f32 %v1635, %v24
    %v1637 = vmul.f32 %v1635, %v25
    %v1638 = vmul.f32 %v1635, %v26
    %v1639 = vmul.f32 %v1635, %v27
    %v1640 = vmul.f32 %v1635, %v28
    %v1641 = vmul.f32 %v1635, %v29
    %v1642 = vmul.f32 %v1635, %v30
    %v1643 = vmul.f32 %v1635, %v31
    %v1644 = vmul.f32 %v1635, %v32
    %v1645 = vmul.f32 %v1635, %v33
    %v1646 = vmul.f32 %v1635, %v34
    %v1647 = vmul.f32 %v1635, %v35
    %v1648 = vmul.f32 %v1635, %v36
    %v1649 = vmul.f32 %v1635, %v37
    %v1650 = vmul.f32 %v1635, %v38
    %v1651 = vmul.f32 %v1635, %v39
    %v1652 = vmul.f32 %v1635, %v40
    %v1653 = vmul.f32 %v1635, %v41
    %v1654 = vmul.f32 %v1635, %v42
    %v1655 = vmul.f32 %v1635, %v43
    %v1656 = vmul.f32 %v1635, %v44
    %v1657 = vmul.f32 %v1635, %v45
    %v1658 = vmul.f32 %v1635, %v46
    %v1659 = vmul.f32 %v1635, %v47
    %v1660 = vmul.f32 %v1635, %v48
    %v1661 = vmul.f32 %v1635, %v49
    %v1662 = vmul.f32 %v1635, %v50
    %v1663 = vmul.f32 %v1635, %v51
    %v1664 = vmul.f32 %v1635, %v52
    %v1665 = vmul.f32 %v1635, %v53
    %v1666 = vmul.f32 %v1635, %v54
    %v1667 = vmul.f32 %v1635, %v55
    %v1700 = vrot.slane %v1636, 2
    %v1701 = vrot.slane %v1637, 2
    %v1702 = vsel %vm1263, %v1700, %v1701
    %v1703 = vrot.slane %v1638, 2
    %v1704 = vsel %vm1263, %v1701, %v1703
    %v1705 = vrot.slane %v1639, 2
    %v1706 = vsel %vm1263, %v1703, %v1705
    %v1707 = vrot.slane %v1640, 2
    %v1708 = vrot.slane %v1641, 2
    %v1709 = vsel %vm1263, %v1707, %v1708
    %v1710 = vrot.slane %v1642, 2
    %v1711 = vsel %vm1263, %v1708, %v1710
    %v1712 = vrot.slane %v1643, 2
    %v1713 = vsel %vm1263, %v1710, %v1712
    %v1714 = vrot.slane %v1644, 2
    %v1715 = vrot.slane %v1645, 2
    %v1716 = vsel %vm1263, %v1714, %v1715
    %v1717 = vrot.slane %v1646, 2
    %v1718 = vsel %vm1263, %v1715, %v1717
    %v1719 = vrot.slane %v1647, 2
    %v1720 = vsel %vm1263, %v1717, %v1719
    %v1721 = vrot.slane %v1648, 2
    %v1722 = vrot.slane %v1649, 2
    %v1723 = vsel %vm1263, %v1721, %v1722
    %v1724 = vrot.slane %v1650, 2
    %v1725 = vsel %vm1263, %v1722, %v1724
    %v1726 = vrot.slane %v1651, 2
    %v1727 = vsel %vm1263, %v1724, %v1726
    %v1728 = vrot.slane %v1652, 2
    %v1729 = vrot.slane %v1653, 2
    %v1730 = vsel %vm1263, %v1728, %v1729
    %v1731 = vrot.slane %v1654, 2
    %v1732 = vsel %vm1263, %v1729, %v1731
    %v1733 = vrot.slane %v1655, 2
    %v1734 = vsel %vm1263, %v1731, %v1733
    %v1735 = vrot.slane %v1656, 2
    %v1736 = vrot.slane %v1657, 2
    %v1737 = vsel %vm1263, %v1735, %v1736
    %v1738 = vrot.slane %v1658, 2
    %v1739 = vsel %vm1263, %v1736, %v1738
    %v1740 = vrot.slane %v1659, 2
    %v1741 = vsel %vm1263, %v1738, %v1740
    %v1742 = vrot.slane %v1660, 2
    %v1743 = vrot.slane %v1661, 2
    %v1744 = vsel %vm1263, %v1742, %v1743
    %v1745 = vrot.slane %v1662, 2
    %v1746 = vsel %vm1263, %v1743, %v1745
    %v1747 = vrot.slane %v1663, 2
    %v1748 = vsel %vm1263, %v1745, %v1747
    %v1749 = vrot.slane %v1664, 2
    %v1750 = vrot.slane %v1665, 2
    %v1751 = vsel %vm1263, %v1749, %v1750
    %v1752 = vrot.slane %v1666, 2
    %v1753 = vsel %vm1263, %v1750, %v1752
    %v1754 = vrot.slane %v1667, 2
    %v1755 = vsel %vm1263, %v1752, %v1754
    %1756 = vrot.lane.b32.xlu0 %v1702, 126
    %v1757 = vpop.permute.xlu0 %1756
    %1758 = vrot.lane.b32.xlu0 %v1704, 126
    %v1759 = vpop.permute.xlu0 %1758
    %1760 = vrot.lane.b32.xlu0 %v1706, 126
    %v1761 = vpop.permute.xlu0 %1760
    %1762 = vrot.lane.b32.xlu0 %v1705, 126
    %v1763 = vpop.permute.xlu0 %1762
    %1764 = vrot.lane.b32.xlu0 %v1709, 126
    %v1765 = vpop.permute.xlu0 %1764
    %1766 = vrot.lane.b32.xlu0 %v1711, 126
    %v1767 = vpop.permute.xlu0 %1766
    %1768 = vrot.lane.b32.xlu0 %v1713, 126
    %v1769 = vpop.permute.xlu0 %1768
    %1770 = vrot.lane.b32.xlu0 %v1712, 126
    %v1771 = vpop.permute.xlu0 %1770
    %1772 = vrot.lane.b32.xlu0 %v1716, 126
    %v1773 = vpop.permute.xlu0 %1772
    %1774 = vrot.lane.b32.xlu0 %v1718, 126
    %v1775 = vpop.permute.xlu0 %1774
    %1776 = vrot.lane.b32.xlu0 %v1720, 126
    %v1777 = vpop.permute.xlu0 %1776
    %1778 = vrot.lane.b32.xlu0 %v1719, 126
    %v1779 = vpop.permute.xlu0 %1778
    %1780 = vrot.lane.b32.xlu0 %v1723, 126
    %v1781 = vpop.permute.xlu0 %1780
    %1782 = vrot.lane.b32.xlu0 %v1725, 126
    %v1783 = vpop.permute.xlu0 %1782
    %1784 = vrot.lane.b32.xlu0 %v1727, 126
    %v1785 = vpop.permute.xlu0 %1784
    %1786 = vrot.lane.b32.xlu0 %v1726, 126
    %v1787 = vpop.permute.xlu0 %1786
    %1788 = vrot.lane.b32.xlu0 %v1730, 126
    %v1789 = vpop.permute.xlu0 %1788
    %1790 = vrot.lane.b32.xlu0 %v1732, 126
    %v1791 = vpop.permute.xlu0 %1790
    %1792 = vrot.lane.b32.xlu0 %v1734, 126
    %v1793 = vpop.permute.xlu0 %1792
    %1794 = vrot.lane.b32.xlu0 %v1733, 126
    %v1795 = vpop.permute.xlu0 %1794
    %1796 = vrot.lane.b32.xlu0 %v1737, 126
    %v1797 = vpop.permute.xlu0 %1796
    %1798 = vrot.lane.b32.xlu0 %v1739, 126
    %v1799 = vpop.permute.xlu0 %1798
    %1800 = vrot.lane.b32.xlu0 %v1741, 126
    %v1801 = vpop.permute.xlu0 %1800
    %1802 = vrot.lane.b32.xlu0 %v1740, 126
    %v1803 = vpop.permute.xlu0 %1802
    %1804 = vrot.lane.b32.xlu0 %v1744, 126
    %v1805 = vpop.permute.xlu0 %1804
    %1806 = vrot.lane.b32.xlu0 %v1746, 126
    %v1807 = vpop.permute.xlu0 %1806
    %1808 = vrot.lane.b32.xlu0 %v1748, 126
    %v1809 = vpop.permute.xlu0 %1808
    %1810 = vrot.lane.b32.xlu0 %v1747, 126
    %v1811 = vpop.permute.xlu0 %1810
    %1812 = vrot.lane.b32.xlu0 %v1751, 126
    %v1813 = vpop.permute.xlu0 %1812
    %1814 = vrot.lane.b32.xlu0 %v1753, 126
    %v1815 = vpop.permute.xlu0 %1814
    %1816 = vrot.lane.b32.xlu0 %v1755, 126
    %v1817 = vpop.permute.xlu0 %1816
    %1818 = vrot.lane.b32.xlu0 %v1754, 126
    %v1819 = vpop.permute.xlu0 %1818
    %v1852 = vadd.f32 %v1602, %v1757
    %v1853 = vadd.f32 %v1603, %v1759
    %v1854 = vadd.f32 %v1604, %v1761
    %v1855 = vadd.f32 %v1605, %v1763
    %v1856 = vadd.f32 %v1606, %v1765
    %v1857 = vadd.f32 %v1607, %v1767
    %v1858 = vadd.f32 %v1608, %v1769
    %v1859 = vadd.f32 %v1609, %v1771
    %v1860 = vadd.f32 %v1610, %v1773
    %v1861 = vadd.f32 %v1611, %v1775
    %v1862 = vadd.f32 %v1612, %v1777
    %v1863 = vadd.f32 %v1613, %v1779
    %v1864 = vadd.f32 %v1614, %v1781
    %v1865 = vadd.f32 %v1615, %v1783
    %v1866 = vadd.f32 %v1616, %v1785
    %v1867 = vadd.f32 %v1617, %v1787
    %v1868 = vadd.f32 %v1618, %v1789
    %v1869 = vadd.f32 %v1619, %v1791
    %v1870 = vadd.f32 %v1620, %v1793
    %v1871 = vadd.f32 %v1621, %v1795
    %v1872 = vadd.f32 %v1622, %v1797
    %v1873 = vadd.f32 %v1623, %v1799
    %v1874 = vadd.f32 %v1624, %v1801
    %v1875 = vadd.f32 %v1625, %v1803
    %v1876 = vadd.f32 %v1626, %v1805
    %v1877 = vadd.f32 %v1627, %v1807
    %v1878 = vadd.f32 %v1628, %v1809
    %v1879 = vadd.f32 %v1629, %v1811
    %v1880 = vadd.f32 %v1630, %v1813
    %v1881 = vadd.f32 %v1631, %v1815
    %v1882 = vadd.f32 %v1632, %v1817
    %v1883 = vadd.f32 %v1633, %v1819
    %vm1884 = vcmask 211968
    %1885 = vst.msk [vmem:[%s2] sm:$0xff] %vm1884, %v1852
    %1886 = vst.msk [vmem:[%s2 + $0x8] sm:$0xff] %vm1884, %v1853
    %1887 = vst.msk [vmem:[%s2 + $0x10] sm:$0xff] %vm1884, %v1854
    %vm1888 = vcmask 205824
    %1889 = vst.msk [vmem:[%s2 + $0x18] sm:$0x3] %vm1888, %v1855
    %1890 = vst.msk [vmem:[%s2 + $0x20] sm:$0xff] %vm1884, %v1856
    %1891 = vst.msk [vmem:[%s2 + $0x28] sm:$0xff] %vm1884, %v1857
    %1892 = vst.msk [vmem:[%s2 + $0x30] sm:$0xff] %vm1884, %v1858
    %1893 = vst.msk [vmem:[%s2 + $0x38] sm:$0x3] %vm1888, %v1859
    %1894 = vst.msk [vmem:[%s2 + $0x40] sm:$0xff] %vm1884, %v1860
    %1895 = vst.msk [vmem:[%s2 + $0x48] sm:$0xff] %vm1884, %v1861
    %1896 = vst.msk [vmem:[%s2 + $0x50] sm:$0xff] %vm1884, %v1862
    %1897 = vst.msk [vmem:[%s2 + $0x58] sm:$0x3] %vm1888, %v1863
    %1898 = vst.msk [vmem:[%s2 + $0x60] sm:$0xff] %vm1884, %v1864
    %1899 = vst.msk [vmem:[%s2 + $0x68] sm:$0xff] %vm1884, %v1865
    %1900 = vst.msk [vmem:[%s2 + $0x70] sm:$0xff] %vm1884, %v1866
    %1901 = vst.msk [vmem:[%s2 + $0x78] sm:$0x3] %vm1888, %v1867
    %1902 = vst.msk [vmem:[%s2 + $0x80] sm:$0xff] %vm1884, %v1868
    %1903 = vst.msk [vmem:[%s2 + $0x88] sm:$0xff] %vm1884, %v1869
    %1904 = vst.msk [vmem:[%s2 + $0x90] sm:$0xff] %vm1884, %v1870
    %1905 = vst.msk [vmem:[%s2 + $0x98] sm:$0x3] %vm1888, %v1871
    %1906 = vst.msk [vmem:[%s2 + $0xa0] sm:$0xff] %vm1884, %v1872
    %1907 = vst.msk [vmem:[%s2 + $0xa8] sm:$0xff] %vm1884, %v1873
    %1908 = vst.msk [vmem:[%s2 + $0xb0] sm:$0xff] %vm1884, %v1874
    %1909 = vst.msk [vmem:[%s2 + $0xb8] sm:$0x3] %vm1888, %v1875
    %1910 = vst.msk [vmem:[%s2 + $0xc0] sm:$0xff] %vm1884, %v1876
    %1911 = vst.msk [vmem:[%s2 + $0xc8] sm:$0xff] %vm1884, %v1877
    %1912 = vst.msk [vmem:[%s2 + $0xd0] sm:$0xff] %vm1884, %v1878
    %1913 = vst.msk [vmem:[%s2 + $0xd8] sm:$0x3] %vm1888, %v1879
    %1914 = vst.msk [vmem:[%s2 + $0xe0] sm:$0xff] %vm1884, %v1880
    %1915 = vst.msk [vmem:[%s2 + $0xe8] sm:$0xff] %vm1884, %v1881
    %1916 = vst.msk [vmem:[%s2 + $0xf0] sm:$0xff] %vm1884, %v1882
    %1917 = vst.msk [vmem:[%s2 + $0xf8] sm:$0x3] %vm1888, %v1883
    // Predicated region
    $region14: #{tpu_custom_call.1} parent=1 // pred_check
      _
    $region15: #{tpu_custom_call.1} parent=1 // pred_check_branch
      %1919 = sbr.rel (0) target = $region17
    $region16: #{tpu_custom_call.1} parent=1 // pred_region
      _
    $region17: #{tpu_custom_call.1} parent=1 // pred_fallthru
      _
    // Predicated region
    $region18: #{tpu_custom_call.1} parent=1 // pred_check
      _
    $region19: #{tpu_custom_call.1} parent=1 // pred_check_branch
      %1921 = sbr.rel (0) target = $region21
    $region20: #{tpu_custom_call.1} parent=1 // pred_region
      _
    $region21: #{tpu_custom_call.1} parent=1 // pred_fallthru
      _
    %1922 = vsyncpa [#allocation3], 1

</llo_original>
